<compile_context>
chip_gen: v7x
topology: tpu7x:2x2x1
jax: 0.10.0
libtpu: 0.0.40
codegen_flags: <defaults>
</compile_context>

<pallas_src>
import functools

import jax
import jax.numpy as jnp
from jax import lax
from jax.experimental import pallas as pl
from jax.experimental.pallas import tpu as pltpu


# ----------------------------- Pallas kernel --------------------------------

def _channel_attention_kernel(x_ref, w1_ref, w2_ref, o_ref, sum_ref, max_ref,
                              *, hw, thw, needs_mask):
    """One spatial tile of the avg/max reduction; MLP+sigmoid epilogue at the end.

    x_ref:   (1, C, THW)  current batch element, spatial tile (lanes)
    w1_ref:  (Ch, C)      first 1x1 conv weight
    w2_ref:  (C, Ch)      second 1x1 conv weight
    o_ref:   (1, C, 1)    sigmoid(MLP(avg) + MLP(max)) for this batch element
    sum_ref: (C, 1)       running spatial sum   (f32 scratch)
    max_ref: (C, 1)       running spatial max   (f32 scratch)
    """
    s = pl.program_id(1)

    @pl.when(s == 0)
    def _():
        sum_ref[...] = jnp.zeros(sum_ref.shape, sum_ref.dtype)
        max_ref[...] = jnp.full(max_ref.shape, -jnp.inf, max_ref.dtype)

    blk = x_ref[0].astype(jnp.float32)                    # (C, THW)
    if needs_mask:
        idx = lax.broadcasted_iota(jnp.int32, (1, thw), 1)
        valid = (s * thw + idx) < hw                      # (1, THW)
        blk_sum = jnp.where(valid, blk, 0.0)
        blk_max = jnp.where(valid, blk, -jnp.inf)
    else:
        blk_sum = blk
        blk_max = blk

    sum_ref[...] += jnp.sum(blk_sum, axis=-1, keepdims=True)
    max_ref[...] = jnp.maximum(max_ref[...],
                               jnp.max(blk_max, axis=-1, keepdims=True))

    @pl.when(s == pl.num_programs(1) - 1)
    def _():
        w1 = w1_ref[...]                                  # (Ch, C)
        w2 = w2_ref[...]                                  # (C, Ch)
        avg = sum_ref[...] * (1.0 / hw)                   # (C, 1)
        mx = max_ref[...]                                 # (C, 1)

        # Fuse both MLP applications: columns [avg, max] share the weights.
        p = jnp.concatenate([avg, mx], axis=1)            # (C, 2)
        h = jnp.maximum(
            jnp.dot(w1, p, preferred_element_type=jnp.float32), 0.0)  # (Ch, 2)
        z2 = jnp.dot(w2, h, preferred_element_type=jnp.float32)       # (C, 2)
        z = jnp.sum(z2, axis=1, keepdims=True)            # (C, 1) = MLP(avg)+MLP(max)
        o_ref[0] = (1.0 / (1.0 + jnp.exp(-z))).astype(o_ref.dtype)


# ------------------------------ wrapper --------------------------------------

def channel_attention_forward(x, w1, w2, *, max_block_hw=2048):
    """ChannelAttentionModule.forward.

    x:  (N, C, H, W)
    w1: (C//ratio, C)   -- Conv2d(C, C//ratio, 1, bias=False).weight squeezed
    w2: (C, C//ratio)   -- Conv2d(C//ratio, C, 1, bias=False).weight squeezed
    returns sigmoid(MLP(avgpool(x)) + MLP(maxpool(x))) of shape (N, C, 1, 1).
    """
    N, C, H, W = x.shape
    Ch = w1.shape[0]
    assert w1.shape == (Ch, C) and w2.shape == (C, Ch)
    HW = H * W

    # Lane tile for the spatial reduction: multiple of 128, bounded for VMEM.
    thw = min(max_block_hw, pl.cdiv(HW, 128) * 128)
    hw_pad = pl.cdiv(HW, thw) * thw
    needs_mask = hw_pad != HW

    xr = x.reshape(N, C, HW)                              # free reshape (NCHW)
    if needs_mask:
        xr = jnp.pad(xr, ((0, 0), (0, 0), (0, hw_pad - HW)))
    n_blocks = hw_pad // thw

    kernel = functools.partial(_channel_attention_kernel,
                               hw=HW, thw=thw, needs_mask=needs_mask)

    out = pl.pallas_call(
        kernel,
        out_shape=jax.ShapeDtypeStruct((N, C, 1), x.dtype),
        grid_spec=pltpu.PrefetchScalarGridSpec(
            num_scalar_prefetch=0,
            grid=(N, n_blocks),
            in_specs=[
                pl.BlockSpec((1, C, thw), lambda n, s: (n, 0, s)),
                pl.BlockSpec((Ch, C), lambda n, s: (0, 0)),
                pl.BlockSpec((C, Ch), lambda n, s: (0, 0)),
            ],
            out_specs=pl.BlockSpec((1, C, 1), lambda n, s: (n, 0, 0)),
            scratch_shapes=[pltpu.VMEM((C, 1), jnp.float32),
                            pltpu.VMEM((C, 1), jnp.float32)],
        ),
        compiler_params=pltpu.CompilerParams(
            dimension_semantics=("parallel", "arbitrary"),
            vmem_limit_bytes=32 * 1024 * 1024),
        cost_estimate=pl.CostEstimate(
            flops=int(2 * N * C * HW + 8 * N * C * Ch),
            transcendentals=int(N * C),
            bytes_accessed=int(xr.size * xr.dtype.itemsize
                               + (w1.size + w2.size + N * C) * 4)),
    )(xr, w1.astype(jnp.float32), w2.astype(jnp.float32))

    return out.reshape(N, C, 1, 1)


# ------------------------------ reference ------------------------------------

def _reference_forward(x, w1, w2):
    """Pure-JAX reference (matches the PyTorch module's forward)."""
    avg = jnp.mean(x, axis=(2, 3))                        # (N, C)
    mx = jnp.max(x, axis=(2, 3))                          # (N, C)

    def mlp(p):
        h = jnp.maximum(p @ w1.T, 0.0)                    # (N, Ch)
        return h @ w2.T                                   # (N, C)

    y = jax.nn.sigmoid(mlp(avg) + mlp(mx))
    return y[:, :, None, None]


# --------------------------------- main ---------------------------------------

if __name__ == "__main__":
    key = jax.random.PRNGKey(0)
    k_x, k_w1, k_w2 = jax.random.split(key, 3)

    N, C, H, W = 2, 64, 16, 16         # channel=64, ratio=16 -> hidden=4
    ratio = 16
    Ch = C // ratio

    x = jax.random.normal(k_x, (N, C, H, W), dtype=jnp.float32)
    w1 = jax.random.normal(k_w1, (Ch, C), dtype=jnp.float32) * 0.05
    w2 = jax.random.normal(k_w2, (C, Ch), dtype=jnp.float32) * 0.05

    out = jax.block_until_ready(channel_attention_forward(x, w1, w2))
    ref = jax.block_until_ready(_reference_forward(x, w1, w2))

    assert out.shape == (N, C, 1, 1), out.shape
    assert jnp.allclose(out, ref, atol=1e-5, rtol=1e-5), float(
        jnp.max(jnp.abs(out - ref)))

    print("KERNEL_OK")
</pallas_src>

<mosaic_0001>
module attributes {stable_mosaic.version = 11 : i64} {
  func.func @_channel_attention_kernel(%arg0: i32, %arg1: i32, %arg2: memref<1x64x256xf32, #tpu.memory_space<vmem>>, %arg3: memref<4x64xf32, #tpu.memory_space<vmem>>, %arg4: memref<64x4xf32, #tpu.memory_space<vmem>>, %arg5: memref<1x64x1xf32, #tpu.memory_space<vmem>>, %arg6: memref<64x1xf32, #tpu.memory_space<vmem>>, %arg7: memref<64x1xf32, #tpu.memory_space<vmem>>) attributes {dimension_semantics = [#tpu.dimension_semantics<parallel>, #tpu.dimension_semantics<arbitrary>], iteration_bounds = array<i64: 2, 1>, scalar_prefetch = 0 : i64, scratch_operands = 2 : i64, tpu.core_type = #tpu.core_type<tc>, window_params = [{transform_indices = @transform_0, window_bounds = array<i64: 1, 64, 256>}, {pipeline_mode = #tpu.pipeline_mode<synchronous>, transform_indices = @transform_1, window_bounds = array<i64: 4, 64>}, {pipeline_mode = #tpu.pipeline_mode<synchronous>, transform_indices = @transform_2, window_bounds = array<i64: 64, 4>}, {transform_indices = @transform_3, window_bounds = array<i64: 1, 64, 1>}]} {
    %c0_i32 = arith.constant 0 : i32
    %0 = arith.cmpi eq, %arg1, %c0_i32 : i32
    %1 = arith.extui %0 : i1 to i32
    %c0_i32_0 = arith.constant 0 : i32
    %2 = arith.cmpi ne, %1, %c0_i32_0 : i32
    scf.if %2 {
      %cst_14 = arith.constant 0.000000e+00 : f32
      %18 = vector.broadcast %cst_14 : f32 to vector<64x1xf32>
      %c0_15 = arith.constant 0 : index
      %c0_16 = arith.constant 0 : index
      %19 = vector.load %arg6[%c0_15, %c0_16] : memref<64x1xf32, #tpu.memory_space<vmem>>, vector<64x1xf32>
      tpu.vector_store %arg6[%c0_15, %c0_16], %18 {strides = array<i32>} : memref<64x1xf32, #tpu.memory_space<vmem>>, vector<64x1xf32>,
      %cst_17 = arith.constant 0xFF800000 : f32
      %20 = vector.broadcast %cst_17 : f32 to vector<64x1xf32>
      %c0_18 = arith.constant 0 : index
      %c0_19 = arith.constant 0 : index
      %21 = vector.load %arg7[%c0_18, %c0_19] : memref<64x1xf32, #tpu.memory_space<vmem>>, vector<64x1xf32>
      tpu.vector_store %arg7[%c0_18, %c0_19], %20 {strides = array<i32>} : memref<64x1xf32, #tpu.memory_space<vmem>>, vector<64x1xf32>,
    } else {
    }
    %c0 = arith.constant 0 : index
    %c0_1 = arith.constant 0 : index
    %c0_2 = arith.constant 0 : index
    %3 = vector.load %arg2[%c0, %c0_1, %c0_2] : memref<1x64x256xf32, #tpu.memory_space<vmem>>, vector<1x64x256xf32>
    %4 = vector.shape_cast %3 : vector<1x64x256xf32> to vector<64x256xf32>
    %c0_3 = arith.constant 0 : index
    %c0_4 = arith.constant 0 : index
    %5 = vector.load %arg6[%c0_3, %c0_4] : memref<64x1xf32, #tpu.memory_space<vmem>>, vector<64x1xf32>
    %cst = arith.constant dense<0.000000e+00> : vector<64xf32>
    %6 = vector.multi_reduction <add>, %4, %cst [1] : vector<64x256xf32> to vector<64xf32>
    %7 = vector.shape_cast %6 : vector<64xf32> to vector<64x1xf32>
    %8 = arith.addf %5, %7 : vector<64x1xf32>
    %c0_5 = arith.constant 0 : index
    %c0_6 = arith.constant 0 : index
    %9 = vector.load %arg6[%c0_5, %c0_6] : memref<64x1xf32, #tpu.memory_space<vmem>>, vector<64x1xf32>
    tpu.vector_store %arg6[%c0_5, %c0_6], %8 {strides = array<i32>} : memref<64x1xf32, #tpu.memory_space<vmem>>, vector<64x1xf32>,
    %c0_7 = arith.constant 0 : index
    %c0_8 = arith.constant 0 : index
    %10 = vector.load %arg7[%c0_7, %c0_8] : memref<64x1xf32, #tpu.memory_space<vmem>>, vector<64x1xf32>
    %cst_9 = arith.constant dense<0xFF800000> : vector<64xf32>
    %11 = vector.multi_reduction <maximumf>, %4, %cst_9 [1] : vector<64x256xf32> to vector<64xf32>
    %12 = vector.shape_cast %11 : vector<64xf32> to vector<64x1xf32>
    %13 = arith.maximumf %10, %12 : vector<64x1xf32>
    %c0_10 = arith.constant 0 : index
    %c0_11 = arith.constant 0 : index
    %14 = vector.load %arg7[%c0_10, %c0_11] : memref<64x1xf32, #tpu.memory_space<vmem>>, vector<64x1xf32>
    tpu.vector_store %arg7[%c0_10, %c0_11], %13 {strides = array<i32>} : memref<64x1xf32, #tpu.memory_space<vmem>>, vector<64x1xf32>,
    %c0_i32_12 = arith.constant 0 : i32
    %15 = arith.cmpi eq, %arg1, %c0_i32_12 : i32
    %16 = arith.extui %15 : i1 to i32
    %c0_i32_13 = arith.constant 0 : i32
    %17 = arith.cmpi ne, %16, %c0_i32_13 : i32
    scf.if %17 {
      %c0_14 = arith.constant 0 : index
      %c0_15 = arith.constant 0 : index
      %18 = vector.load %arg3[%c0_14, %c0_15] : memref<4x64xf32, #tpu.memory_space<vmem>>, vector<4x64xf32>
      %c0_16 = arith.constant 0 : index
      %c0_17 = arith.constant 0 : index
      %19 = vector.load %arg4[%c0_16, %c0_17] : memref<64x4xf32, #tpu.memory_space<vmem>>, vector<64x4xf32>
      %c0_18 = arith.constant 0 : index
      %c0_19 = arith.constant 0 : index
      %20 = vector.load %arg6[%c0_18, %c0_19] : memref<64x1xf32, #tpu.memory_space<vmem>>, vector<64x1xf32>
      %cst_20 = arith.constant 3.906250e-03 : f32
      %21 = vector.broadcast %cst_20 : f32 to vector<64x1xf32>
      %22 = arith.mulf %20, %21 : vector<64x1xf32>
      %c0_21 = arith.constant 0 : index
      %c0_22 = arith.constant 0 : index
      %23 = vector.load %arg7[%c0_21, %c0_22] : memref<64x1xf32, #tpu.memory_space<vmem>>, vector<64x1xf32>
      %24 = tpu.concatenate %22, %23 in 1 : vector<64x1xf32>, vector<64x1xf32> -> vector<64x2xf32>
      %cst_23 = arith.constant dense<0.000000e+00> : vector<4x2xf32>
      %25 = tpu.matmul %18, %24, %cst_23 {dimension_numbers = #tpu.dot_dimension_numbers<[1], [0], [0], [1], [0, 0, 1, 1], [], []>} : vector<4x64xf32>, vector<64x2xf32>, vector<4x2xf32> -> vector<4x2xf32>
      %cst_24 = arith.constant 0.000000e+00 : f32
      %26 = vector.broadcast %cst_24 : f32 to vector<4x2xf32>
      %27 = arith.maximumf %25, %26 : vector<4x2xf32>
      %cst_25 = arith.constant dense<0.000000e+00> : vector<64x2xf32>
      %28 = tpu.matmul %19, %27, %cst_25 {dimension_numbers = #tpu.dot_dimension_numbers<[1], [0], [0], [1], [0, 0, 1, 1], [], []>} : vector<64x4xf32>, vector<4x2xf32>, vector<64x2xf32> -> vector<64x2xf32>
      %cst_26 = arith.constant dense<0.000000e+00> : vector<64xf32>
      %29 = vector.multi_reduction <add>, %28, %cst_26 [1] : vector<64x2xf32> to vector<64xf32>
      %30 = vector.shape_cast %29 : vector<64xf32> to vector<64x1xf32>
      %cst_27 = arith.constant 0.000000e+00 : f32
      %31 = vector.broadcast %cst_27 : f32 to vector<64x1xf32>
      %32 = arith.subf %31, %30 : vector<64x1xf32>
      %33 = math.exp %32 : vector<64x1xf32>
      %cst_28 = arith.constant 1.000000e+00 : f32
      %34 = vector.broadcast %cst_28 : f32 to vector<64x1xf32>
      %35 = arith.addf %34, %33 : vector<64x1xf32>
      %cst_29 = arith.constant 1.000000e+00 : f32
      %36 = vector.broadcast %cst_29 : f32 to vector<64x1xf32>
      %37 = arith.divf %36, %35 : vector<64x1xf32>
      %c0_30 = arith.constant 0 : index
      %c0_31 = arith.constant 0 : index
      %c0_32 = arith.constant 0 : index
      %38 = vector.load %arg5[%c0_30, %c0_31, %c0_32] : memref<1x64x1xf32, #tpu.memory_space<vmem>>, vector<1x64x1xf32>
      %39 = vector.shape_cast %38 : vector<1x64x1xf32> to vector<64x1xf32>
      %40 = vector.shape_cast %37 : vector<64x1xf32> to vector<1x64x1xf32>
      tpu.vector_store %arg5[%c0_30, %c0_31, %c0_32], %40 {strides = array<i32>} : memref<1x64x1xf32, #tpu.memory_space<vmem>>, vector<1x64x1xf32>,
    } else {
    }
    return
  }
  func.func @transform_0(%arg0: i32, %arg1: i32) -> (i32, i32, i32) {
    %c0_i32 = arith.constant 0 : i32
    %c0_i32_0 = arith.constant 0 : i32
    return %arg0, %c0_i32, %arg1 : i32, i32, i32
  }
  func.func @transform_1(%arg0: i32, %arg1: i32) -> (i32, i32) {
    %c0_i32 = arith.constant 0 : i32
    %c0_i32_0 = arith.constant 0 : i32
    %c0_i32_1 = arith.constant 0 : i32
    return %c0_i32, %c0_i32_0 : i32, i32
  }
  func.func @transform_2(%arg0: i32, %arg1: i32) -> (i32, i32) {
    %c0_i32 = arith.constant 0 : i32
    %c0_i32_0 = arith.constant 0 : i32
    %c0_i32_1 = arith.constant 0 : i32
    return %c0_i32, %c0_i32_0 : i32, i32
  }
  func.func @transform_3(%arg0: i32, %arg1: i32) -> (i32, i32, i32) {
    %c0_i32 = arith.constant 0 : i32
    %c0_i32_0 = arith.constant 0 : i32
    %c0_i32_1 = arith.constant 0 : i32
    return %arg0, %c0_i32, %c0_i32_0 : i32, i32, i32
  }
}

</mosaic_0001>

<llo_original>
// kernel: tpu_custom_call.1
$region0: #{tpu_custom_call.1}
  #allocation0 [shape = 'u32[]', space=smem, size = 0x4, offset = 0x4, fixed_abs, tag = 'smem constant byte address 0x4 - core index']
  #allocation1 [shape = 'u32[144,128]{1,0:T(1,128)}', space=vmem, size = 0x12000, scoped, tag = 'internal scratch']
  #allocation2 [shape = 'f32[64,1]{1,0:T(8,128)}', space=vmem, size = 0x8000, scoped, tag = 'scratch operand']
  #allocation3 [shape = 'f32[64,1]{1,0:T(8,128)}', space=vmem, size = 0x8000, scoped, tag = 'scratch operand']
  %s0 = inlined_call_operand.hbm [shape: f32[2,64,256], index: 0, kind: input, shape index: {}]
  %s1 = inlined_call_operand.vmem [shape: f32[4,64], index: 1, kind: input, shape index: {}]
  %s2 = inlined_call_operand.vmem [shape: f32[64,4], index: 2, kind: input, shape index: {}]
  %s3 = inlined_call_operand.vmem [shape: f32[2,64,1], index: 3, kind: output, shape index: {}]
  %s4 = sld [smem:[#allocation0]]
  $region57: #{tpu_custom_call.1} parent=0
    _
  %s6 = ssub.s32 1, %s4
  %s7 = scalar_select 0, %s6, %s4
  $region1: #{tpu_custom_call.1} parent=0
    #allocation4 [shape = 'u8[131072]{0}', space=vmem, size = 0x20000, scoped, tag = 'input window, operand 0']
    #allocation5 [shape = 's32[2]{0}', space=sflag, size = 0x8, scoped, tag = 'scoped memory for tpu_custom_call.1']
    %8 = vsyncpa [#allocation5], 0
    %s9 = scalar_lea.sflag [#allocation5], 1
    %10 = vsyncpa %s9, 0
    loop: start=0, step=1, limit=4
    $region2: #{tpu_custom_call.1} parent=1 // loop_pre_header
      _
    $region3: #{tpu_custom_call.1} parent=1 // loop_header
      %s12 = sphi 0, %s16
      %p13 = scmp.ge.s32.totalorder %s12, 4
      %s19 = sphi 0, %s31
      %s20 = sphi 0, %s27
      %s21 = sphi 0, %s19
      %s22 = sphi 0, %s20
      %s23 = sphi 0, %s21
      %s24 = sphi 0, %s22
      %s36 = sphi 0, %s38
      %s39 = sphi 0, %s36
      %s40 = sphi 0, %s39
      %s56 = sphi 0, %s40
      %s60 = sphi 0, %s60
      %s62 = sphi 0, %s60
      %s63 = sphi 0, %s62
      %s77 = sphi 0, %s63
      %s81 = sphi 0, %s81
      %s83 = sphi 0, %s81
      %s84 = sphi 0, %s83
      %s98 = sphi 0, %s84
      %s104 = sphi 0, %s106
      %s107 = sphi 0, %s104
      %s108 = sphi 0, %s107
      %s124 = sphi 0, %s108
    $region4: #{tpu_custom_call.1} parent=1 // loop_header_branch
      %15 = sbr.rel (%p13) target = $region8
    $region5: #{tpu_custom_call.1} parent=1 // loop_body
      %s17 = ssub.s32 %s12, 1
      %s18 = ssub.s32 %s12, 2
      %s25 = sadd.s32 1, %s20
      %p26 = scmp.ge.s32.totalorder %s25, 1
      %s27 = scalar_select %p26, 0, %s25
      %s28 = sadd.s32 1, %s19
      %s29 = scalar_select %p26, %s28, %s19
      %p30 = scmp.ge.s32.totalorder %s29, 2
      %s31 = scalar_select %p30, 0, %s29
      %s32 = ssub.s32 %s19, %s31
      %s33 = ssub.s32 %s20, %s27
      %s34 = sor.u32 %s32, %s33
      %p35 = scmp.eq.s32.totalorder %s34, 0
      %s37 = sadd.s32 %s36, 1
      %s38 = scalar_select %p35, %s36, %s37
      %p41 = pneg %p35
      %p42 = scmp.eq.s32.totalorder %s12, 1
      %p43 = por %p41, %p42
      %p44 = scmp.ne.s32.totalorder %s36, %s39
      %p45 = scmp.eq.s32.totalorder %s12, 0
      %p46 = por %p44, %p45
      %p47 = scmp.ne.s32.totalorder %s36, %s39
      %p48 = scmp.eq.s32.totalorder %s17, 1
      %p49 = por %p47, %p48
      %p50 = scmp.ne.s32.totalorder %s39, %s40
      %p51 = scmp.eq.s32.totalorder %s17, 0
      %p52 = por %p50, %p51
      %p53 = scmp.ne.s32.totalorder %s39, %s40
      %p54 = scmp.eq.s32.totalorder %s18, 1
      %p55 = por %p53, %p54
      %p57 = scmp.ne.s32.totalorder %s40, %s56
      %p58 = scmp.eq.s32.totalorder %s18, 0
      %p59 = por %p57, %p58
      %s61 = sadd.s32 %s60, 1
      %p64 = scmp.eq.s32.totalorder %s12, 1
      %p65 = scmp.ne.s32.totalorder %s60, %s62
      %p66 = scmp.eq.s32.totalorder %s12, 0
      %p67 = por %p65, %p66
      %p68 = scmp.ne.s32.totalorder %s60, %s62
      %p69 = scmp.eq.s32.totalorder %s17, 1
      %p70 = por %p68, %p69
      %p71 = scmp.ne.s32.totalorder %s62, %s63
      %p72 = scmp.eq.s32.totalorder %s17, 0
      %p73 = por %p71, %p72
      %p74 = scmp.ne.s32.totalorder %s62, %s63
      %p75 = scmp.eq.s32.totalorder %s18, 1
      %p76 = por %p74, %p75
      %p78 = scmp.ne.s32.totalorder %s63, %s77
      %p79 = scmp.eq.s32.totalorder %s18, 0
      %p80 = por %p78, %p79
      %s82 = sadd.s32 %s81, 1
      %p85 = scmp.eq.s32.totalorder %s12, 1
      %p86 = scmp.ne.s32.totalorder %s81, %s83
      %p87 = scmp.eq.s32.totalorder %s12, 0
      %p88 = por %p86, %p87
      %p89 = scmp.ne.s32.totalorder %s81, %s83
      %p90 = scmp.eq.s32.totalorder %s17, 1
      %p91 = por %p89, %p90
      %p92 = scmp.ne.s32.totalorder %s83, %s84
      %p93 = scmp.eq.s32.totalorder %s17, 0
      %p94 = por %p92, %p93
      %p95 = scmp.ne.s32.totalorder %s83, %s84
      %p96 = scmp.eq.s32.totalorder %s18, 1
      %p97 = por %p95, %p96
      %p99 = scmp.ne.s32.totalorder %s84, %s98
      %p100 = scmp.eq.s32.totalorder %s18, 0
      %p101 = por %p99, %p100
      %s102 = ssub.s32 %s19, %s31
      %p103 = scmp.eq.s32.totalorder %s102, 0
      %s105 = sadd.s32 %s104, 1
      %s106 = scalar_select %p103, %s104, %s105
      %p109 = pneg %p103
      %p110 = scmp.eq.s32.totalorder %s12, 1
      %p111 = por %p109, %p110
      %p112 = scmp.ne.s32.totalorder %s104, %s107
      %p113 = scmp.eq.s32.totalorder %s12, 0
      %p114 = por %p112, %p113
      %p115 = scmp.ne.s32.totalorder %s104, %s107
      %p116 = scmp.eq.s32.totalorder %s17, 1
      %p117 = por %p115, %p116
      %p118 = scmp.ne.s32.totalorder %s107, %s108
      %p119 = scmp.eq.s32.totalorder %s17, 0
      %p120 = por %p118, %p119
      %p121 = scmp.ne.s32.totalorder %s107, %s108
      %p122 = scmp.eq.s32.totalorder %s18, 1
      %p123 = por %p121, %p122
      %p125 = scmp.ne.s32.totalorder %s108, %s124
      %p126 = scmp.eq.s32.totalorder %s18, 0
      %p127 = por %p125, %p126
      %p128 = scmp.le.s32.totalorder 1, %s12
      %p129 = scmp.lt.s32.totalorder %s12, 3
      %p130 = pnand %p128, %p129
      %p131 = pneg %p130
      // Predicated region
      $region9: #{tpu_custom_call.1} parent=5 // pred_check
        _
      $region10: #{tpu_custom_call.1} parent=5 // pred_check_branch
        %133 = sbr.rel (%p130) target = $region12
      $region11: #{tpu_custom_call.1} parent=5 // pred_region
        %s134 = ssub.s32 %s12, 1
        // Predicated region
        $region13: #{tpu_custom_call.1} parent=11 // pred_check
          %p135 = pneg %p73
        $region14: #{tpu_custom_call.1} parent=11 // pred_check_branch
          %137 = sbr.rel (%p135) target = $region16
        $region15: #{tpu_custom_call.1} parent=11 // pred_region
          _
        $region16: #{tpu_custom_call.1} parent=11 // pred_fallthru
          _
        // Predicated region
        $region17: #{tpu_custom_call.1} parent=11 // pred_check
          %p138 = pneg %p94
        $region18: #{tpu_custom_call.1} parent=11 // pred_check_branch
          %140 = sbr.rel (%p138) target = $region20
        $region19: #{tpu_custom_call.1} parent=11 // pred_region
          _
        $region20: #{tpu_custom_call.1} parent=11 // pred_fallthru
          _
      $region12: #{tpu_custom_call.1} parent=5 // pred_fallthru
        _
      %p141 = scmp.lt.s32.totalorder %s12, 2
      // Predicated region
      $region21: #{tpu_custom_call.1} parent=5 // pred_check
        %p142 = pneg %p141
      $region22: #{tpu_custom_call.1} parent=5 // pred_check_branch
        %144 = sbr.rel (%p142) target = $region24
      $region23: #{tpu_custom_call.1} parent=5 // pred_region
        // Predicated region
        $region25: #{tpu_custom_call.1} parent=23 // pred_check
          %p145 = pneg %p46
        $region26: #{tpu_custom_call.1} parent=23 // pred_check_branch
          %147 = sbr.rel (%p145) target = $region28
        $region27: #{tpu_custom_call.1} parent=23 // pred_region
          %s148 = sand.u32 %s36, 1
          %s149 = scalar_lea.sflag [#allocation5], %s148
          %s150 = sand.u32 %s36, 1
          %s151 = smul.addr %s150, 128
          %s152 = scalar_lea.vmem [#allocation4], %s151
          %s153 = smul.u32 2, %s20
          %s155 = ssub.s32 2048, 2048
          %156 = vsyncadd %s149, %s155
          %s157 = smul.addr %s19, 16
          %s158 = sadd.s32 %s153, %s157
          %s159 = smul.addr %s158, 128
          %s160 = scalar_lea.hbm %s0, %s159
          %s161 = sshll.u32 %s152, 4
          %s162 = int_to_ptr.vmem [resolvable:$true] %s161
          %167 = dma.hbm_to_vmem [thread:$0]  %s160, 2048, %s162, %s149, 256, 256, 16
        $region28: #{tpu_custom_call.1} parent=23 // pred_fallthru
          _
      $region24: #{tpu_custom_call.1} parent=5 // pred_fallthru
        _
      %p168 = scmp.le.s32.totalorder 1, %s12
      %p169 = scmp.lt.s32.totalorder %s12, 3
      %p170 = pnand %p168, %p169
      %p171 = pneg %p170
      // Predicated region
      $region29: #{tpu_custom_call.1} parent=5 // pred_check
        _
      $region30: #{tpu_custom_call.1} parent=5 // pred_check_branch
        %173 = sbr.rel (%p170) target = $region32
      $region31: #{tpu_custom_call.1} parent=5 // pred_region
        %s174 = ssub.s32 %s12, 1
        %s175 = sand.u32 %s39, 1
        %s176 = scalar_lea.sflag [#allocation5], %s175
        %s177 = sand.u32 %s39, 1
        %s178 = smul.addr %s177, 128
        %s179 = scalar_lea.vmem [#allocation4], %s178
        // Predicated region
        $region33: #{tpu_custom_call.1} parent=31 // pred_check
          %p180 = pneg %p52
        $region34: #{tpu_custom_call.1} parent=31 // pred_check_branch
          %182 = sbr.rel (%p180) target = $region36
        $region35: #{tpu_custom_call.1} parent=31 // pred_region
          %183 = dma.done %s176, 2048
        $region36: #{tpu_custom_call.1} parent=31 // pred_fallthru
          _
        %s184 = sand.u32 %s39, 1
        %s185 = scalar_lea.sflag [#allocation5], %s184
        %s186 = sand.u32 %s39, 1
        %s187 = smul.addr %s186, 128
        %s188 = scalar_lea.vmem [#allocation4], %s187
        %p189 = pneg %p52
        %p190 = pneg %p49
        %p191 = pneg %p73
        %p192 = pneg %p70
        %p193 = pneg %p94
        %p194 = pneg %p91
        %p195 = pneg %p120
        %p196 = pneg %p117
        %p197 = scmp.lt.s32.totalorder %s21, 1
        %s198 = scalar_select %p197, %s21, 1
        %s199 = smul.addr %s198, 8
        %s200 = smul.addr %s199, 8
        %s201 = scalar_lea.vmem %s3, %s200
        %s202 = smul.u32 2, %s22
        %p203 = scmp.lt.s32.totalorder %s21, 1
        %s204 = scalar_select %p203, %s21, 1
        %s205 = smul.addr %s204, 8
        %s206 = smul.addr %s205, 8
        %s207 = scalar_lea.vmem %s3, %s206
        %p208 = scmp.eq.s32.totalorder %s22, 0
        // Predicated region
        $region37: #{tpu_custom_call.1} parent=31 // pred_check
          %p209 = pneg %p208
        $region38: #{tpu_custom_call.1} parent=31 // pred_check_branch
          %211 = sbr.rel (%p209) target = $region40
        $region39: #{tpu_custom_call.1} parent=31 // pred_region
          %vm212 = vcmask 7168
          %213 = vst.msk [vmem:[#allocation2] sm:$0xff] %vm212, 0.0
          %214 = vst.msk [vmem:[#allocation2 + $0x8] sm:$0xff] %vm212, 0.0
          %215 = vst.msk [vmem:[#allocation2 + $0x10] sm:$0xff] %vm212, 0.0
          %216 = vst.msk [vmem:[#allocation2 + $0x18] sm:$0xff] %vm212, 0.0
          %217 = vst.msk [vmem:[#allocation2 + $0x20] sm:$0xff] %vm212, 0.0
          %218 = vst.msk [vmem:[#allocation2 + $0x28] sm:$0xff] %vm212, 0.0
          %219 = vst.msk [vmem:[#allocation2 + $0x30] sm:$0xff] %vm212, 0.0
          %220 = vst.msk [vmem:[#allocation2 + $0x38] sm:$0xff] %vm212, 0.0
          %221 = vst.msk [vmem:[#allocation3] sm:$0xff] %vm212, -inf
          %222 = vst.msk [vmem:[#allocation3 + $0x8] sm:$0xff] %vm212, -inf
          %223 = vst.msk [vmem:[#allocation3 + $0x10] sm:$0xff] %vm212, -inf
          %224 = vst.msk [vmem:[#allocation3 + $0x18] sm:$0xff] %vm212, -inf
          %225 = vst.msk [vmem:[#allocation3 + $0x20] sm:$0xff] %vm212, -inf
          %226 = vst.msk [vmem:[#allocation3 + $0x28] sm:$0xff] %vm212, -inf
          %227 = vst.msk [vmem:[#allocation3 + $0x30] sm:$0xff] %vm212, -inf
          %228 = vst.msk [vmem:[#allocation3 + $0x38] sm:$0xff] %vm212, -inf
        $region40: #{tpu_custom_call.1} parent=31 // pred_fallthru
          _
        %v229 = vld [vmem:[%s179] sm:$0xff]
        %v230 = vld [vmem:[%s179 + $0x8] sm:$0xff]
        %v231 = vld [vmem:[%s179 + $0x10] sm:$0xff]
        %v232 = vld [vmem:[%s179 + $0x18] sm:$0xff]
        %v233 = vld [vmem:[%s179 + $0x20] sm:$0xff]
        %v234 = vld [vmem:[%s179 + $0x28] sm:$0xff]
        %v235 = vld [vmem:[%s179 + $0x30] sm:$0xff]
        %v236 = vld [vmem:[%s179 + $0x38] sm:$0xff]
        %v237 = vld [vmem:[%s179 + $0x40] sm:$0xff]
        %v238 = vld [vmem:[%s179 + $0x48] sm:$0xff]
        %v239 = vld [vmem:[%s179 + $0x50] sm:$0xff]
        %v240 = vld [vmem:[%s179 + $0x58] sm:$0xff]
        %v241 = vld [vmem:[%s179 + $0x60] sm:$0xff]
        %v242 = vld [vmem:[%s179 + $0x68] sm:$0xff]
        %v243 = vld [vmem:[%s179 + $0x70] sm:$0xff]
        %v244 = vld [vmem:[%s179 + $0x78] sm:$0xff]
        %v245 = vld [vmem:[#allocation2] sm:$0xff]
        %v246 = vld [vmem:[#allocation2 + $0x8] sm:$0xff]
        %v247 = vld [vmem:[#allocation2 + $0x10] sm:$0xff]
        %v248 = vld [vmem:[#allocation2 + $0x18] sm:$0xff]
        %v249 = vld [vmem:[#allocation2 + $0x20] sm:$0xff]
        %v250 = vld [vmem:[#allocation2 + $0x28] sm:$0xff]
        %v251 = vld [vmem:[#allocation2 + $0x30] sm:$0xff]
        %v252 = vld [vmem:[#allocation2 + $0x38] sm:$0xff]
        %v253 = vadd.f32 %v229, %v230
        %254 = vadd.xlane.f32.xlu0 %v253
        %v255 = vpop.xlane.xlu0 %254
        %v256 = vadd.f32 %v231, %v232
        %257 = vadd.xlane.f32.xlu0 %v256
        %v258 = vpop.xlane.xlu0 %257
        %v259 = vadd.f32 %v233, %v234
        %260 = vadd.xlane.f32.xlu0 %v259
        %v261 = vpop.xlane.xlu0 %260
        %v262 = vadd.f32 %v235, %v236
        %263 = vadd.xlane.f32.xlu0 %v262
        %v264 = vpop.xlane.xlu0 %263
        %v265 = vadd.f32 %v237, %v238
        %266 = vadd.xlane.f32.xlu0 %v265
        %v267 = vpop.xlane.xlu0 %266
        %v268 = vadd.f32 %v239, %v240
        %269 = vadd.xlane.f32.xlu0 %v268
        %v270 = vpop.xlane.xlu0 %269
        %v271 = vadd.f32 %v241, %v242
        %272 = vadd.xlane.f32.xlu0 %v271
        %v273 = vpop.xlane.xlu0 %272
        %v274 = vadd.f32 %v243, %v244
        %275 = vadd.xlane.f32.xlu0 %v274
        %v276 = vpop.xlane.xlu0 %275
        %v277 = vadd.f32 %v245, %v255
        %v278 = vadd.f32 %v246, %v258
        %v279 = vadd.f32 %v247, %v261
        %v280 = vadd.f32 %v248, %v264
        %v281 = vadd.f32 %v249, %v267
        %v282 = vadd.f32 %v250, %v270
        %v283 = vadd.f32 %v251, %v273
        %v284 = vadd.f32 %v252, %v276
        %vm285 = vcmask 7168
        %286 = vst.msk [vmem:[#allocation2] sm:$0xff] %vm285, %v277
        %287 = vst.msk [vmem:[#allocation2 + $0x8] sm:$0xff] %vm285, %v278
        %288 = vst.msk [vmem:[#allocation2 + $0x10] sm:$0xff] %vm285, %v279
        %289 = vst.msk [vmem:[#allocation2 + $0x18] sm:$0xff] %vm285, %v280
        %290 = vst.msk [vmem:[#allocation2 + $0x20] sm:$0xff] %vm285, %v281
        %291 = vst.msk [vmem:[#allocation2 + $0x28] sm:$0xff] %vm285, %v282
        %292 = vst.msk [vmem:[#allocation2 + $0x30] sm:$0xff] %vm285, %v283
        %293 = vst.msk [vmem:[#allocation2 + $0x38] sm:$0xff] %vm285, %v284
        %v294 = vld [vmem:[#allocation3] sm:$0xff]
        %v295 = vld [vmem:[#allocation3 + $0x8] sm:$0xff]
        %v296 = vld [vmem:[#allocation3 + $0x10] sm:$0xff]
        %v297 = vld [vmem:[#allocation3 + $0x18] sm:$0xff]
        %v298 = vld [vmem:[#allocation3 + $0x20] sm:$0xff]
        %v299 = vld [vmem:[#allocation3 + $0x28] sm:$0xff]
        %v300 = vld [vmem:[#allocation3 + $0x30] sm:$0xff]
        %v301 = vld [vmem:[#allocation3 + $0x38] sm:$0xff]
        %v302 = vmax.f32 %v229, %v230
        %303 = vmax.xlane.f32.xlu0 %v302
        %v304 = vpop.xlane.xlu0 %303
        %v305 = vmax.f32 %v231, %v232
        %306 = vmax.xlane.f32.xlu0 %v305
        %v307 = vpop.xlane.xlu0 %306
        %v308 = vmax.f32 %v233, %v234
        %309 = vmax.xlane.f32.xlu0 %v308
        %v310 = vpop.xlane.xlu0 %309
        %v311 = vmax.f32 %v235, %v236
        %312 = vmax.xlane.f32.xlu0 %v311
        %v313 = vpop.xlane.xlu0 %312
        %v314 = vmax.f32 %v237, %v238
        %315 = vmax.xlane.f32.xlu0 %v314
        %v316 = vpop.xlane.xlu0 %315
        %v317 = vmax.f32 %v239, %v240
        %318 = vmax.xlane.f32.xlu0 %v317
        %v319 = vpop.xlane.xlu0 %318
        %v320 = vmax.f32 %v241, %v242
        %321 = vmax.xlane.f32.xlu0 %v320
        %v322 = vpop.xlane.xlu0 %321
        %v323 = vmax.f32 %v243, %v244
        %324 = vmax.xlane.f32.xlu0 %v323
        %v325 = vpop.xlane.xlu0 %324
        %v326 = vmax.f32 %v294, %v304
        %v327 = vmax.f32 %v295, %v307
        %v328 = vmax.f32 %v296, %v310
        %v329 = vmax.f32 %v297, %v313
        %v330 = vmax.f32 %v298, %v316
        %v331 = vmax.f32 %v299, %v319
        %v332 = vmax.f32 %v300, %v322
        %v333 = vmax.f32 %v301, %v325
        %334 = vst.msk [vmem:[#allocation3] sm:$0xff] %vm285, %v326
        %335 = vst.msk [vmem:[#allocation3 + $0x8] sm:$0xff] %vm285, %v327
        %336 = vst.msk [vmem:[#allocation3 + $0x10] sm:$0xff] %vm285, %v328
        %337 = vst.msk [vmem:[#allocation3 + $0x18] sm:$0xff] %vm285, %v329
        %338 = vst.msk [vmem:[#allocation3 + $0x20] sm:$0xff] %vm285, %v330
        %339 = vst.msk [vmem:[#allocation3 + $0x28] sm:$0xff] %vm285, %v331
        %340 = vst.msk [vmem:[#allocation3 + $0x30] sm:$0xff] %vm285, %v332
        %341 = vst.msk [vmem:[#allocation3 + $0x38] sm:$0xff] %vm285, %v333
        // Predicated region
        $region41: #{tpu_custom_call.1} parent=31 // pred_check
          %p342 = pneg %p208
        $region42: #{tpu_custom_call.1} parent=31 // pred_check_branch
          %344 = sbr.rel (%p342) target = $region44
        $region43: #{tpu_custom_call.1} parent=31 // pred_region
          %v345 = vld [vmem:[%s1] sm:$0xf]
          %v346 = vld [vmem:[%s2] sm:$0xff]
          %v347 = vld [vmem:[%s2 + $0x8] sm:$0xff]
          %v348 = vld [vmem:[%s2 + $0x10] sm:$0xff]
          %v349 = vld [vmem:[%s2 + $0x18] sm:$0xff]
          %v350 = vld [vmem:[%s2 + $0x20] sm:$0xff]
          %v351 = vld [vmem:[%s2 + $0x28] sm:$0xff]
          %v352 = vld [vmem:[%s2 + $0x30] sm:$0xff]
          %v353 = vld [vmem:[%s2 + $0x38] sm:$0xff]
          %v354 = vld [vmem:[#allocation2] sm:$0xff]
          %v355 = vld [vmem:[#allocation2 + $0x8] sm:$0xff]
          %v356 = vld [vmem:[#allocation2 + $0x10] sm:$0xff]
          %v357 = vld [vmem:[#allocation2 + $0x18] sm:$0xff]
          %v358 = vld [vmem:[#allocation2 + $0x20] sm:$0xff]
          %v359 = vld [vmem:[#allocation2 + $0x28] sm:$0xff]
          %v360 = vld [vmem:[#allocation2 + $0x30] sm:$0xff]
          %v361 = vld [vmem:[#allocation2 + $0x38] sm:$0xff]
          %v362 = vmul.f32 %v354, 0.00390625
          %v363 = vmul.f32 %v355, 0.00390625
          %v364 = vmul.f32 %v356, 0.00390625
          %v365 = vmul.f32 %v357, 0.00390625
          %v366 = vmul.f32 %v358, 0.00390625
          %v367 = vmul.f32 %v359, 0.00390625
          %v368 = vmul.f32 %v360, 0.00390625
          %v369 = vmul.f32 %v361, 0.00390625
          %v370 = vld [vmem:[#allocation3] sm:$0xff]
          %v371 = vld [vmem:[#allocation3 + $0x8] sm:$0xff]
          %v372 = vld [vmem:[#allocation3 + $0x10] sm:$0xff]
          %v373 = vld [vmem:[#allocation3 + $0x18] sm:$0xff]
          %v374 = vld [vmem:[#allocation3 + $0x20] sm:$0xff]
          %v375 = vld [vmem:[#allocation3 + $0x28] sm:$0xff]
          %v376 = vld [vmem:[#allocation3 + $0x30] sm:$0xff]
          %v377 = vld [vmem:[#allocation3 + $0x38] sm:$0xff]
          %386 = vrot.lane.b32.xlu0 %v370, 1
          %v387 = vpop.permute.xlu0 %386
          %388 = vrot.lane.b32.xlu0 %v371, 1
          %v389 = vpop.permute.xlu0 %388
          %390 = vrot.lane.b32.xlu0 %v372, 1
          %v391 = vpop.permute.xlu0 %390
          %392 = vrot.lane.b32.xlu0 %v373, 1
          %v393 = vpop.permute.xlu0 %392
          %394 = vrot.lane.b32.xlu0 %v374, 1
          %v395 = vpop.permute.xlu0 %394
          %396 = vrot.lane.b32.xlu0 %v375, 1
          %v397 = vpop.permute.xlu0 %396
          %398 = vrot.lane.b32.xlu0 %v376, 1
          %v399 = vpop.permute.xlu0 %398
          %400 = vrot.lane.b32.xlu0 %v377, 1
          %v401 = vpop.permute.xlu0 %400
          %v410 = vsel %vm285, %v362, %v387
          %v411 = vsel %vm285, %v363, %v389
          %v412 = vsel %vm285, %v364, %v391
          %v413 = vsel %vm285, %v365, %v393
          %v414 = vsel %vm285, %v366, %v395
          %v415 = vsel %vm285, %v367, %v397
          %v416 = vsel %vm285, %v368, %v399
          %v417 = vsel %vm285, %v369, %v401
          %vm418 = vcmask 523264
          %v420 = vsel %vm418, %v345, 0
          %422 = vmatprep.subr.mxu0 0.0
          %423 = vmatpush1.msra.mxu0 %v410
          %424 = vmatprep.subr.mxu0 0.0
          %425 = vmatpush1.msra.mxu0 %v411
          %426 = vmatprep.subr.mxu0 0.0
          %427 = vmatpush1.msra.mxu0 %v412
          %428 = vmatprep.subr.mxu0 0.0
          %429 = vmatpush1.msra.mxu0 %v413
          %430 = vmatprep.subr.mxu0 0.0
          %431 = vmatpush1.msra.mxu0 %v414
          %432 = vmatprep.subr.mxu0 0.0
          %433 = vmatpush1.msra.mxu0 %v415
          %434 = vmatprep.subr.mxu0 0.0
          %435 = vmatpush1.msra.mxu0 %v416
          %436 = vmatprep.subr.mxu0 0.0
          %437 = vmatpush1.msra.mxu0 %v417
          %438 = vmatprep.subr.mxu0 0.0
          %439 = vmatpush1.msra.mxu0 0.0
          %440 = vmatprep.subr.mxu0 0.0
          %441 = vmatpush1.msra.mxu0 0.0
          %442 = vmatprep.subr.mxu0 0.0
          %443 = vmatpush1.msra.mxu0 0.0
          %444 = vmatprep.subr.mxu0 0.0
          %445 = vmatpush1.msra.mxu0 0.0
          %446 = vmatprep.subr.mxu0 0.0
          %447 = vmatpush1.msra.mxu0 0.0
          %448 = vmatprep.subr.mxu0 0.0
          %449 = vmatpush1.msra.mxu0 0.0
          %450 = vmatprep.subr.mxu0 0.0
          %451 = vmatpush1.msra.mxu0 0.0
          %452 = vmatprep.subr.mxu0 0.0
          %453 = vmatpush1.msra.mxu0 0.0
          %454 = vmatprep.subr.mxu0 0.0
          %455 = vmatpush1.msra.mxu0 0.0
          %456 = vmatprep.subr.mxu0 0.0
          %457 = vmatpush1.msra.mxu0 0.0
          %458 = vmatprep.subr.mxu0 0.0
          %459 = vmatpush1.msra.mxu0 0.0
          %460 = vmatprep.subr.mxu0 0.0
          %461 = vmatpush1.msra.mxu0 0.0
          %462 = vmatprep.subr.mxu0 0.0
          %463 = vmatpush1.msra.mxu0 0.0
          %464 = vmatprep.subr.mxu0 0.0
          %465 = vmatpush1.msra.mxu0 0.0
          %466 = vmatprep.subr.mxu0 0.0
          %467 = vmatpush1.msra.mxu0 0.0
          %468 = vmatprep.subr.mxu0 0.0
          %469 = vmatpush1.msra.mxu0 0.0
          %470 = vmatprep.subr.mxu0 0.0
          %471 = vmatpush1.msra.mxu0 0.0
          %472 = vmatprep.subr.mxu0 0.0
          %473 = vmatpush1.msra.mxu0 0.0
          %474 = vmatprep.subr.mxu0 0.0
          %475 = vmatpush1.msra.mxu0 0.0
          %476 = vmatprep.subr.mxu0 0.0
          %477 = vmatpush1.msra.mxu0 0.0
          %478 = vmatprep.subr.mxu0 0.0
          %479 = vmatpush1.msra.mxu0 0.0
          %480 = vmatprep.subr.mxu0 0.0
          %481 = vmatpush1.msra.mxu0 0.0
          %482 = vmatprep.subr.mxu0 0.0
          %483 = vmatpush1.msra.mxu0 0.0
          %484 = vmatprep.subr.mxu0 0.0
          %485 = vmatpush1.msra.mxu0 0.0
          %486 = vmatprep.mubr.f32.mxu0 0.0
          %487 = vmatmul.mubr.f32.gmra.mrb[0].mxu0 %v420
          %v488 = vpop.f32.mrb[0].mxu0
          %v489 = vadd.f32 0.0, %v488
          %v490 = vpop.f32.mrb[0].mxu0
          %491 = vdwg.mxu0
          %v492 = vmax.f32 %v489, 0.0
          %vm493 = vcmask 31744
          %v495 = vsel %vm493, %v346, 0
          %v498 = vsel %vm493, %v347, 0
          %v501 = vsel %vm493, %v348, 0
          %v504 = vsel %vm493, %v349, 0
          %v507 = vsel %vm493, %v350, 0
          %v510 = vsel %vm493, %v351, 0
          %v513 = vsel %vm493, %v352, 0
          %v516 = vsel %vm493, %v353, 0
          %vm518 = vcmask 1043456
          %v520 = vsel %vm518, %v492, 0
          %522 = vmatprep.subr.mxu0 0.0
          %523 = vmatpush1.msra.mxu0 %v520
          %524 = vmatprep.subr.mxu0 0.0
          %525 = vmatpush1.msra.mxu0 0.0
          %526 = vmatprep.subr.mxu0 0.0
          %527 = vmatpush1.msra.mxu0 0.0
          %528 = vmatprep.subr.mxu0 0.0
          %529 = vmatpush1.msra.mxu0 0.0
          %530 = vmatprep.subr.mxu0 0.0
          %531 = vmatpush1.msra.mxu0 0.0
          %532 = vmatprep.subr.mxu0 0.0
          %533 = vmatpush1.msra.mxu0 0.0
          %534 = vmatprep.subr.mxu0 0.0
          %535 = vmatpush1.msra.mxu0 0.0
          %536 = vmatprep.subr.mxu0 0.0
          %537 = vmatpush1.msra.mxu0 0.0
          %538 = vmatprep.subr.mxu0 0.0
          %539 = vmatpush1.msra.mxu0 0.0
          %540 = vmatprep.subr.mxu0 0.0
          %541 = vmatpush1.msra.mxu0 0.0
          %542 = vmatprep.subr.mxu0 0.0
          %543 = vmatpush1.msra.mxu0 0.0
          %544 = vmatprep.subr.mxu0 0.0
          %545 = vmatpush1.msra.mxu0 0.0
          %546 = vmatprep.subr.mxu0 0.0
          %547 = vmatpush1.msra.mxu0 0.0
          %548 = vmatprep.subr.mxu0 0.0
          %549 = vmatpush1.msra.mxu0 0.0
          %550 = vmatprep.subr.mxu0 0.0
          %551 = vmatpush1.msra.mxu0 0.0
          %552 = vmatprep.subr.mxu0 0.0
          %553 = vmatpush1.msra.mxu0 0.0
          %554 = vmatprep.subr.mxu0 0.0
          %555 = vmatpush1.msra.mxu0 0.0
          %556 = vmatprep.subr.mxu0 0.0
          %557 = vmatpush1.msra.mxu0 0.0
          %558 = vmatprep.subr.mxu0 0.0
          %559 = vmatpush1.msra.mxu0 0.0
          %560 = vmatprep.subr.mxu0 0.0
          %561 = vmatpush1.msra.mxu0 0.0
          %562 = vmatprep.subr.mxu0 0.0
          %563 = vmatpush1.msra.mxu0 0.0
          %564 = vmatprep.subr.mxu0 0.0
          %565 = vmatpush1.msra.mxu0 0.0
          %566 = vmatprep.subr.mxu0 0.0
          %567 = vmatpush1.msra.mxu0 0.0
          %568 = vmatprep.subr.mxu0 0.0
          %569 = vmatpush1.msra.mxu0 0.0
          %570 = vmatprep.subr.mxu0 0.0
          %571 = vmatpush1.msra.mxu0 0.0
          %572 = vmatprep.subr.mxu0 0.0
          %573 = vmatpush1.msra.mxu0 0.0
          %574 = vmatprep.subr.mxu0 0.0
          %575 = vmatpush1.msra.mxu0 0.0
          %576 = vmatprep.subr.mxu0 0.0
          %577 = vmatpush1.msra.mxu0 0.0
          %578 = vmatprep.subr.mxu0 0.0
          %579 = vmatpush1.msra.mxu0 0.0
          %580 = vmatprep.subr.mxu0 0.0
          %581 = vmatpush1.msra.mxu0 0.0
          %582 = vmatprep.subr.mxu0 0.0
          %583 = vmatpush1.msra.mxu0 0.0
          %584 = vmatprep.subr.mxu0 0.0
          %585 = vmatpush1.msra.mxu0 0.0
          %586 = vmatprep.mubr.f32.mxu0 0.0
          %587 = vmatmul.mubr.f32.gmra.mrb[0].mxu0 %v495
          %v588 = vpop.f32.mrb[0].mxu0
          %v589 = vadd.f32 0.0, %v588
          %v590 = vpop.f32.mrb[0].mxu0
          %591 = vmatprep.mubr.f32.mxu0 0.0
          %592 = vmatmul.mubr.f32.gmra.mrb[0].mxu0 %v498
          %v593 = vpop.f32.mrb[0].mxu0
          %v594 = vadd.f32 0.0, %v593
          %v595 = vpop.f32.mrb[0].mxu0
          %596 = vmatprep.mubr.f32.mxu0 0.0
          %597 = vmatmul.mubr.f32.gmra.mrb[0].mxu0 %v501
          %v598 = vpop.f32.mrb[0].mxu0
          %v599 = vadd.f32 0.0, %v598
          %v600 = vpop.f32.mrb[0].mxu0
          %601 = vmatprep.mubr.f32.mxu0 0.0
          %602 = vmatmul.mubr.f32.gmra.mrb[0].mxu0 %v504
          %v603 = vpop.f32.mrb[0].mxu0
          %v604 = vadd.f32 0.0, %v603
          %v605 = vpop.f32.mrb[0].mxu0
          %606 = vmatprep.mubr.f32.mxu0 0.0
          %607 = vmatmul.mubr.f32.gmra.mrb[0].mxu0 %v507
          %v608 = vpop.f32.mrb[0].mxu0
          %v609 = vadd.f32 0.0, %v608
          %v610 = vpop.f32.mrb[0].mxu0
          %611 = vmatprep.mubr.f32.mxu0 0.0
          %612 = vmatmul.mubr.f32.gmra.mrb[0].mxu0 %v510
          %v613 = vpop.f32.mrb[0].mxu0
          %v614 = vadd.f32 0.0, %v613
          %v615 = vpop.f32.mrb[0].mxu0
          %616 = vmatprep.mubr.f32.mxu0 0.0
          %617 = vmatmul.mubr.f32.gmra.mrb[0].mxu0 %v513
          %v618 = vpop.f32.mrb[0].mxu0
          %v619 = vadd.f32 0.0, %v618
          %v620 = vpop.f32.mrb[0].mxu0
          %621 = vmatprep.mubr.f32.mxu0 0.0
          %622 = vmatmul.mubr.f32.gmra.mrb[0].mxu0 %v516
          %v623 = vpop.f32.mrb[0].mxu0
          %v624 = vadd.f32 0.0, %v623
          %v625 = vpop.f32.mrb[0].mxu0
          %626 = vdwg.mxu0
          %vm627 = vcmask 15360
          %v628 = vsel %vm627, %v589, 0.0
          %629 = vadd.xlane.f32.xlu0 %v628
          %v630 = vpop.xlane.xlu0 %629
          %v631 = vsel %vm627, %v594, 0.0
          %632 = vadd.xlane.f32.xlu0 %v631
          %v633 = vpop.xlane.xlu0 %632
          %v634 = vsel %vm627, %v599, 0.0
          %635 = vadd.xlane.f32.xlu0 %v634
          %v636 = vpop.xlane.xlu0 %635
          %v637 = vsel %vm627, %v604, 0.0
          %638 = vadd.xlane.f32.xlu0 %v637
          %v639 = vpop.xlane.xlu0 %638
          %v640 = vsel %vm627, %v609, 0.0
          %641 = vadd.xlane.f32.xlu0 %v640
          %v642 = vpop.xlane.xlu0 %641
          %v643 = vsel %vm627, %v614, 0.0
          %644 = vadd.xlane.f32.xlu0 %v643
          %v645 = vpop.xlane.xlu0 %644
          %v646 = vsel %vm627, %v619, 0.0
          %647 = vadd.xlane.f32.xlu0 %v646
          %v648 = vpop.xlane.xlu0 %647
          %v649 = vsel %vm627, %v624, 0.0
          %650 = vadd.xlane.f32.xlu0 %v649
          %v651 = vpop.xlane.xlu0 %650
          %v652 = vsub.f32 0.0, %v630
          %v653 = vsub.f32 0.0, %v633
          %v654 = vsub.f32 0.0, %v636
          %v655 = vsub.f32 0.0, %v639
          %v656 = vsub.f32 0.0, %v642
          %v657 = vsub.f32 0.0, %v645
          %v658 = vsub.f32 0.0, %v648
          %v659 = vsub.f32 0.0, %v651
          %v660 = vmul.f32 %v652, 1.442695
          %v661 = vpow.pop %v660
          %v662 = vmul.f32 %v653, 1.442695
          %v663 = vpow.pop %v662
          %v664 = vmul.f32 %v654, 1.442695
          %v665 = vpow.pop %v664
          %v666 = vmul.f32 %v655, 1.442695
          %v667 = vpow.pop %v666
          %v668 = vmul.f32 %v656, 1.442695
          %v669 = vpow.pop %v668
          %v670 = vmul.f32 %v657, 1.442695
          %v671 = vpow.pop %v670
          %v672 = vmul.f32 %v658, 1.442695
          %v673 = vpow.pop %v672
          %v674 = vmul.f32 %v659, 1.442695
          %v675 = vpow.pop %v674
          %v676 = vadd.f32 %v661, 1.0
          %v677 = vadd.f32 %v663, 1.0
          %v678 = vadd.f32 %v665, 1.0
          %v679 = vadd.f32 %v667, 1.0
          %v680 = vadd.f32 %v669, 1.0
          %v681 = vadd.f32 %v671, 1.0
          %v682 = vadd.f32 %v673, 1.0
          %v683 = vadd.f32 %v675, 1.0
          %v684 = vrcp.pop %v676
          %v685 = vmul.f32 1.0, %v684
          %v686 = vrcp.pop %v677
          %v687 = vmul.f32 1.0, %v686
          %v688 = vrcp.pop %v678
          %v689 = vmul.f32 1.0, %v688
          %v690 = vrcp.pop %v679
          %v691 = vmul.f32 1.0, %v690
          %v692 = vrcp.pop %v680
          %v693 = vmul.f32 1.0, %v692
          %v694 = vrcp.pop %v681
          %v695 = vmul.f32 1.0, %v694
          %v696 = vrcp.pop %v682
          %v697 = vmul.f32 1.0, %v696
          %v698 = vrcp.pop %v683
          %v699 = vmul.f32 1.0, %v698
          %700 = vst.msk [vmem:[%s207] sm:$0xff] %vm285, %v685
          %701 = vst.msk [vmem:[%s207 + $0x8] sm:$0xff] %vm285, %v687
          %702 = vst.msk [vmem:[%s207 + $0x10] sm:$0xff] %vm285, %v689
          %703 = vst.msk [vmem:[%s207 + $0x18] sm:$0xff] %vm285, %v691
          %704 = vst.msk [vmem:[%s207 + $0x20] sm:$0xff] %vm285, %v693
          %705 = vst.msk [vmem:[%s207 + $0x28] sm:$0xff] %vm285, %v695
          %706 = vst.msk [vmem:[%s207 + $0x30] sm:$0xff] %vm285, %v697
          %707 = vst.msk [vmem:[%s207 + $0x38] sm:$0xff] %vm285, %v699
        $region44: #{tpu_custom_call.1} parent=31 // pred_fallthru
          _
        %p708 = scmp.lt.s32.totalorder %s21, 1
        %s709 = scalar_select %p708, %s21, 1
        %s710 = smul.addr %s709, 8
        %s711 = smul.addr %s710, 8
        %s712 = scalar_lea.vmem %s3, %s711
        // Predicated region
        $region45: #{tpu_custom_call.1} parent=31 // pred_check
          %p713 = pneg %p117
        $region46: #{tpu_custom_call.1} parent=31 // pred_check_branch
          %715 = sbr.rel (%p713) target = $region48
        $region47: #{tpu_custom_call.1} parent=31 // pred_region
          _
        $region48: #{tpu_custom_call.1} parent=31 // pred_fallthru
          _
      $region32: #{tpu_custom_call.1} parent=5 // pred_fallthru
        _
      %p716 = scmp.le.s32.totalorder 2, %s12
      // Predicated region
      $region49: #{tpu_custom_call.1} parent=5 // pred_check
        %p717 = pneg %p716
      $region50: #{tpu_custom_call.1} parent=5 // pred_check_branch
        %719 = sbr.rel (%p717) target = $region52
      $region51: #{tpu_custom_call.1} parent=5 // pred_region
        %s720 = ssub.s32 %s12, 2
        // Predicated region
        $region53: #{tpu_custom_call.1} parent=51 // pred_check
          %p721 = pneg %p123
        $region54: #{tpu_custom_call.1} parent=51 // pred_check_branch
          %723 = sbr.rel (%p721) target = $region56
        $region55: #{tpu_custom_call.1} parent=51 // pred_region
          %p724 = scmp.lt.s32.totalorder %s23, 1
          %s725 = scalar_select %p724, %s23, 1
          %s726 = smul.addr %s725, 8
          %s727 = smul.addr %s726, 8
          %s728 = scalar_lea.vmem %s3, %s727
        $region56: #{tpu_custom_call.1} parent=51 // pred_fallthru
          _
      $region52: #{tpu_custom_call.1} parent=5 // pred_fallthru
        _
    $region6: #{tpu_custom_call.1} parent=1 // loop_footer
      %s16 = sadd.s32 1, %s12
    $region7: #{tpu_custom_call.1} parent=1 // loop_footer_branch
      %11 = sbr.rel target = $region3
    $region8: #{tpu_custom_call.1} parent=1 // loop_exit
      _
    %729 = vsyncpa [#allocation5], 1
    %s730 = scalar_lea.sflag [#allocation5], 1
    %731 = vsyncpa %s730, 1

</llo_original>
